<compile_context>
chip_gen: v7x
topology: tpu7x:2x2x1
jax: 0.10.0
libtpu: 0.0.40
codegen_flags: <defaults>
</compile_context>

<pallas_src>
import functools

import jax
import jax.numpy as jnp
from jax.experimental import pallas as pl
from jax.experimental.pallas import tpu as pltpu


def _dlinear_kernel(horizon, x_ref, w_ref, b_ref, out_ref):
    # x_ref: (TB, seq_len, D)   w_ref: (seq_len, D)   b_ref: (1, D)
    # out_ref: (TB, horizon * D)
    x = x_ref[...]
    w = w_ref[...]
    # Depthwise contraction over the window -> (TB, D); bias broadcasts (1, D).
    y = jnp.sum(x * w[None, :, :], axis=1) + b_ref[...]
    # out[b, h*D + i] = y[b, i]  (horizon broadcast + permute + flatten),
    # written as one lane-dense tile.
    out_ref[...] = jnp.tile(y, (1, horizon))


def dlinear_forward(x, weight, bias, *, seq_len, horizon,
                    return_latents=False, block_b=8):
    """Pallas equivalent of DLinearForecaster.forward.

    x:      (B, T, D) float  — input window (T <= seq_len; left-zero-padded)
    weight: (D, seq_len)     — stacked Conv1d(1,1,seq_len) weights
    bias:   (D,)             — stacked Conv1d biases
    returns (B, horizon * D) — or (out, out, out) when return_latents=True
    """
    x = jnp.asarray(x, jnp.float32)
    B, T, D = x.shape

    if T < seq_len:
        x = jnp.pad(x, ((0, 0), (seq_len - T, 0), (0, 0)))
    elif T > seq_len:
        # TODO(synk): T > seq_len (conv output length > 1, no horizon broadcast)
        # is not implemented in the kernel; standard DLinear usage has T == seq_len.
        raise NotImplementedError("dlinear_forward requires T <= seq_len")

    # Pad the batch to a multiple of the batch block so the (8, 128) tiling
    # rule holds for the output block; slice back afterwards.
    Bp = pl.cdiv(B, block_b) * block_b
    if Bp != B:
        x = jnp.pad(x, ((0, Bp - B), (0, 0), (0, 0)))

    w_t = jnp.asarray(weight, jnp.float32).T            # (seq_len, D), no in-kernel transpose
    b2 = jnp.asarray(bias, jnp.float32).reshape(1, D)

    out = pl.pallas_call(
        functools.partial(_dlinear_kernel, horizon),
        out_shape=jax.ShapeDtypeStruct((Bp, horizon * D), jnp.float32),
        grid=(Bp // block_b,),
        in_specs=[
            pl.BlockSpec((block_b, seq_len, D), lambda i: (i, 0, 0)),
            pl.BlockSpec((seq_len, D), lambda i: (0, 0)),
            pl.BlockSpec((1, D), lambda i: (0, 0)),
        ],
        out_specs=pl.BlockSpec((block_b, horizon * D), lambda i: (i, 0)),
        compiler_params=pltpu.CompilerParams(
            dimension_semantics=("parallel",)),
    )(x, w_t, b2)

    out = out[:B]
    if return_latents:
        return out, out, out
    return out


def _reference(x, weight, bias, seq_len, horizon):
    """Pure-JAX reference matching the PyTorch module."""
    x = jnp.asarray(x, jnp.float32)
    B, T, D = x.shape
    if T < seq_len:
        x = jnp.pad(x, ((0, 0), (seq_len - T, 0), (0, 0)))
    y = jnp.einsum("btd,dt->bd", x, jnp.asarray(weight, jnp.float32)) + bias[None, :]
    out = jnp.broadcast_to(y[:, None, :], (B, horizon, D)).reshape(B, horizon * D)
    return out


if __name__ == "__main__":
    input_dim, seq_len, horizon = 4, 16, 8
    batch = 6  # not a multiple of 8 -> exercises the batch-padding path

    key = jax.random.PRNGKey(0)
    kx, kw, kb = jax.random.split(key, 3)

    # Deterministic "parameters" (module uses per-feature Conv1d(1,1,seq_len)).
    weight = jax.random.normal(kw, (input_dim, seq_len), dtype=jnp.float32) / seq_len
    bias = jax.random.normal(kb, (input_dim,), dtype=jnp.float32)

    # Full-length window (T == seq_len): the standard DLinear path.
    x = jax.random.normal(kx, (batch, seq_len, input_dim), dtype=jnp.float32)
    out = dlinear_forward(x, weight, bias, seq_len=seq_len, horizon=horizon)
    jax.block_until_ready(out)

    ref = _reference(x, weight, bias, seq_len, horizon)
    assert out.shape == (batch, horizon * input_dim)
    assert jnp.allclose(out, ref, atol=1e-5, rtol=1e-5)

    # Short window (T < seq_len): exercises the left-zero-padding path
    # (same padded shapes -> reuses the already-compiled kernel).
    x_short = x[:, : seq_len - 4, :]
    out_short = dlinear_forward(x_short, weight, bias,
                                seq_len=seq_len, horizon=horizon)
    jax.block_until_ready(out_short)
    ref_short = _reference(x_short, weight, bias, seq_len, horizon)
    assert jnp.allclose(out_short, ref_short, atol=1e-5, rtol=1e-5)

    print("KERNEL_OK")
</pallas_src>

<mosaic_0001>
module attributes {stable_mosaic.version = 11 : i64} {
  func.func @_dlinear_kernel(%arg0: i32, %arg1: memref<8x16x4xf32, #tpu.memory_space<vmem>>, %arg2: memref<16x4xf32, #tpu.memory_space<vmem>>, %arg3: memref<1x4xf32, #tpu.memory_space<vmem>>, %arg4: memref<8x32xf32, #tpu.memory_space<vmem>>) attributes {dimension_semantics = [#tpu.dimension_semantics<parallel>], iteration_bounds = array<i64: 1>, scalar_prefetch = 0 : i64, scratch_operands = 0 : i64, tpu.core_type = #tpu.core_type<tc>, window_params = [{transform_indices = @transform_0, window_bounds = array<i64: 8, 16, 4>}, {pipeline_mode = #tpu.pipeline_mode<synchronous>, transform_indices = @transform_1, window_bounds = array<i64: 16, 4>}, {pipeline_mode = #tpu.pipeline_mode<synchronous>, transform_indices = @transform_2, window_bounds = array<i64: 1, 4>}, {transform_indices = @transform_3, window_bounds = array<i64: 8, 32>}]} {
    %c0 = arith.constant 0 : index
    %c0_0 = arith.constant 0 : index
    %c0_1 = arith.constant 0 : index
    %0 = vector.load %arg1[%c0, %c0_0, %c0_1] : memref<8x16x4xf32, #tpu.memory_space<vmem>>, vector<8x16x4xf32>
    %c0_2 = arith.constant 0 : index
    %c0_3 = arith.constant 0 : index
    %1 = vector.load %arg2[%c0_2, %c0_3] : memref<16x4xf32, #tpu.memory_space<vmem>>, vector<16x4xf32>
    %2 = vector.shape_cast %1 : vector<16x4xf32> to vector<1x16x4xf32>
    %3 = vector.broadcast %2 : vector<1x16x4xf32> to vector<8x16x4xf32>
    %4 = arith.mulf %0, %3 : vector<8x16x4xf32>
    %cst = arith.constant dense<0.000000e+00> : vector<8x4xf32>
    %5 = vector.multi_reduction <add>, %4, %cst [1] : vector<8x16x4xf32> to vector<8x4xf32>
    %c0_4 = arith.constant 0 : index
    %c0_5 = arith.constant 0 : index
    %6 = vector.load %arg3[%c0_4, %c0_5] : memref<1x4xf32, #tpu.memory_space<vmem>>, vector<1x4xf32>
    %7 = vector.broadcast %6 : vector<1x4xf32> to vector<8x4xf32>
    %8 = arith.addf %5, %7 : vector<8x4xf32>
    %9 = tpu.concatenate %8, %8, %8, %8, %8, %8, %8, %8 in 1 : vector<8x4xf32>, vector<8x4xf32>, vector<8x4xf32>, vector<8x4xf32>, vector<8x4xf32>, vector<8x4xf32>, vector<8x4xf32>, vector<8x4xf32> -> vector<8x32xf32>
    %c0_6 = arith.constant 0 : index
    %c0_7 = arith.constant 0 : index
    %10 = vector.load %arg4[%c0_6, %c0_7] : memref<8x32xf32, #tpu.memory_space<vmem>>, vector<8x32xf32>
    tpu.vector_store %arg4[%c0_6, %c0_7], %9 {strides = array<i32>} : memref<8x32xf32, #tpu.memory_space<vmem>>, vector<8x32xf32>,
    return
  }
  func.func @transform_0(%arg0: i32) -> (i32, i32, i32) {
    %c0_i32 = arith.constant 0 : i32
    %c0_i32_0 = arith.constant 0 : i32
    %c0_i32_1 = arith.constant 0 : i32
    return %arg0, %c0_i32, %c0_i32_0 : i32, i32, i32
  }
  func.func @transform_1(%arg0: i32) -> (i32, i32) {
    %c0_i32 = arith.constant 0 : i32
    %c0_i32_0 = arith.constant 0 : i32
    %c0_i32_1 = arith.constant 0 : i32
    return %c0_i32, %c0_i32_0 : i32, i32
  }
  func.func @transform_2(%arg0: i32) -> (i32, i32) {
    %c0_i32 = arith.constant 0 : i32
    %c0_i32_0 = arith.constant 0 : i32
    %c0_i32_1 = arith.constant 0 : i32
    return %c0_i32, %c0_i32_0 : i32, i32
  }
  func.func @transform_3(%arg0: i32) -> (i32, i32) {
    %c0_i32 = arith.constant 0 : i32
    %c0_i32_0 = arith.constant 0 : i32
    return %arg0, %c0_i32 : i32, i32
  }
}

</mosaic_0001>

<llo_original>
// kernel: tpu_custom_call.1
$region0: #{tpu_custom_call.1}
  #allocation0 [shape = 'u32[]', space=smem, size = 0x4, offset = 0x4, fixed_abs, tag = 'smem constant byte address 0x4 - core index']
  #allocation1 [shape = 'u32[144,128]{1,0:T(1,128)}', space=vmem, size = 0x12000, scoped, tag = 'internal scratch']
  %s0 = inlined_call_operand.vmem [shape: f32[8,16,4], index: 0, kind: input, shape index: {}]
  %s1 = inlined_call_operand.vmem [shape: f32[16,4], index: 1, kind: input, shape index: {}]
  %s2 = inlined_call_operand.vmem [shape: f32[1,4], index: 2, kind: input, shape index: {}]
  %s3 = inlined_call_operand.hbm [shape: f32[8,32], index: 3, kind: output, shape index: {}]
  %s4 = sld [smem:[#allocation0]]
  $region22: #{tpu_custom_call.1} parent=0
    _
  %s6 = ssub.s32 1, %s4
  %s7 = scalar_select 0, %s6, %s4
  $region1: #{tpu_custom_call.1} parent=0
    #allocation2 [shape = 'u8[4096]{0}', space=vmem, size = 0x1000, scoped, tag = 'output window, operand 0, single buffered']
    #allocation3 [shape = 's32[1]{0}', space=sflag, size = 0x4, scoped, tag = 'scoped memory for tpu_custom_call.1']
    %8 = vsyncpa [#allocation3], 0
    // Predicated region
    $region2: #{tpu_custom_call.1} parent=1 // pred_check
      _
    $region3: #{tpu_custom_call.1} parent=1 // pred_check_branch
      %10 = sbr.rel (0) target = $region5
    $region4: #{tpu_custom_call.1} parent=1 // pred_region
      _
    $region5: #{tpu_custom_call.1} parent=1 // pred_fallthru
      _
    // Predicated region
    $region6: #{tpu_custom_call.1} parent=1 // pred_check
      _
    $region7: #{tpu_custom_call.1} parent=1 // pred_check_branch
      %12 = sbr.rel (0) target = $region9
    $region8: #{tpu_custom_call.1} parent=1 // pred_region
      _
    $region9: #{tpu_custom_call.1} parent=1 // pred_fallthru
      _
    // Predicated region
    $region10: #{tpu_custom_call.1} parent=1 // pred_check
      _
    $region11: #{tpu_custom_call.1} parent=1 // pred_check_branch
      %14 = sbr.rel (0) target = $region13
    $region12: #{tpu_custom_call.1} parent=1 // pred_region
      _
    $region13: #{tpu_custom_call.1} parent=1 // pred_fallthru
      _
    %v15 = vld [vmem:[%s0] sm:$0xff]
    %v16 = vld [vmem:[%s0 + $0x8] sm:$0xff]
    %v17 = vld [vmem:[%s0 + $0x10] sm:$0xff]
    %v18 = vld [vmem:[%s0 + $0x18] sm:$0xff]
    %v19 = vld [vmem:[%s0 + $0x20] sm:$0xff]
    %v20 = vld [vmem:[%s0 + $0x28] sm:$0xff]
    %v21 = vld [vmem:[%s0 + $0x30] sm:$0xff]
    %v22 = vld [vmem:[%s0 + $0x38] sm:$0xff]
    %v23 = vld [vmem:[%s0 + $0x40] sm:$0xff]
    %v24 = vld [vmem:[%s0 + $0x48] sm:$0xff]
    %v25 = vld [vmem:[%s0 + $0x50] sm:$0xff]
    %v26 = vld [vmem:[%s0 + $0x58] sm:$0xff]
    %v27 = vld [vmem:[%s0 + $0x60] sm:$0xff]
    %v28 = vld [vmem:[%s0 + $0x68] sm:$0xff]
    %v29 = vld [vmem:[%s0 + $0x70] sm:$0xff]
    %v30 = vld [vmem:[%s0 + $0x78] sm:$0xff]
    %v31 = vld [vmem:[%s1] sm:$0xff]
    %v32 = vld [vmem:[%s1 + $0x8] sm:$0xff]
    %v33 = vmul.f32 %v15, %v31
    %v34 = vmul.f32 %v16, %v32
    %v35 = vmul.f32 %v17, %v31
    %v36 = vmul.f32 %v18, %v32
    %v37 = vmul.f32 %v19, %v31
    %v38 = vmul.f32 %v20, %v32
    %v39 = vmul.f32 %v21, %v31
    %v40 = vmul.f32 %v22, %v32
    %v41 = vmul.f32 %v23, %v31
    %v42 = vmul.f32 %v24, %v32
    %v43 = vmul.f32 %v25, %v31
    %v44 = vmul.f32 %v26, %v32
    %v45 = vmul.f32 %v27, %v31
    %v46 = vmul.f32 %v28, %v32
    %v47 = vmul.f32 %v29, %v31
    %v48 = vmul.f32 %v30, %v32
    %vm49 = vcmask 31744
    %v50 = vsel %vm49, %v33, 0.0
    %v51 = vsel %vm49, %v34, 0.0
    %v52 = vadd.f32 %v50, %v51
    %v53 = vrot.slane %v52, 4
    %v54 = vadd.f32 %v52, %v53
    %v55 = vrot.slane %v54, 2
    %v56 = vadd.f32 %v54, %v55
    %v57 = vrot.slane %v56, 1
    %v58 = vadd.f32 %v56, %v57
    %v59 = vsel %vm49, %v35, 0.0
    %v60 = vsel %vm49, %v36, 0.0
    %v61 = vadd.f32 %v59, %v60
    %v62 = vrot.slane %v61, 4
    %v63 = vadd.f32 %v61, %v62
    %v64 = vrot.slane %v63, 2
    %v65 = vadd.f32 %v63, %v64
    %v66 = vrot.slane %v65, 1
    %v67 = vadd.f32 %v65, %v66
    %v68 = vsel %vm49, %v37, 0.0
    %v69 = vsel %vm49, %v38, 0.0
    %v70 = vadd.f32 %v68, %v69
    %v71 = vrot.slane %v70, 4
    %v72 = vadd.f32 %v70, %v71
    %v73 = vrot.slane %v72, 2
    %v74 = vadd.f32 %v72, %v73
    %v75 = vrot.slane %v74, 1
    %v76 = vadd.f32 %v74, %v75
    %v77 = vsel %vm49, %v39, 0.0
    %v78 = vsel %vm49, %v40, 0.0
    %v79 = vadd.f32 %v77, %v78
    %v80 = vrot.slane %v79, 4
    %v81 = vadd.f32 %v79, %v80
    %v82 = vrot.slane %v81, 2
    %v83 = vadd.f32 %v81, %v82
    %v84 = vrot.slane %v83, 1
    %v85 = vadd.f32 %v83, %v84
    %v86 = vsel %vm49, %v41, 0.0
    %v87 = vsel %vm49, %v42, 0.0
    %v88 = vadd.f32 %v86, %v87
    %v89 = vrot.slane %v88, 4
    %v90 = vadd.f32 %v88, %v89
    %v91 = vrot.slane %v90, 2
    %v92 = vadd.f32 %v90, %v91
    %v93 = vrot.slane %v92, 1
    %v94 = vadd.f32 %v92, %v93
    %v95 = vsel %vm49, %v43, 0.0
    %v96 = vsel %vm49, %v44, 0.0
    %v97 = vadd.f32 %v95, %v96
    %v98 = vrot.slane %v97, 4
    %v99 = vadd.f32 %v97, %v98
    %v100 = vrot.slane %v99, 2
    %v101 = vadd.f32 %v99, %v100
    %v102 = vrot.slane %v101, 1
    %v103 = vadd.f32 %v101, %v102
    %v104 = vsel %vm49, %v45, 0.0
    %v105 = vsel %vm49, %v46, 0.0
    %v106 = vadd.f32 %v104, %v105
    %v107 = vrot.slane %v106, 4
    %v108 = vadd.f32 %v106, %v107
    %v109 = vrot.slane %v108, 2
    %v110 = vadd.f32 %v108, %v109
    %v111 = vrot.slane %v110, 1
    %v112 = vadd.f32 %v110, %v111
    %v113 = vsel %vm49, %v47, 0.0
    %v114 = vsel %vm49, %v48, 0.0
    %v115 = vadd.f32 %v113, %v114
    %v116 = vrot.slane %v115, 4
    %v117 = vadd.f32 %v115, %v116
    %v118 = vrot.slane %v117, 2
    %v119 = vadd.f32 %v117, %v118
    %v120 = vrot.slane %v119, 1
    %v121 = vadd.f32 %v119, %v120
    %v122 = vld [vmem:[%s2] sm:$0x1]
    %v124 = vlaneseq
    %v125 = vshrl.u32 %v124, 7
    %v126 = vsub.s32 0, %v125
    %v127 = vrot.slane %v122, %v126
    %v129 = vadd.f32 %v58, %v127
    %v130 = vadd.f32 %v67, %v127
    %v131 = vadd.f32 %v76, %v127
    %v132 = vadd.f32 %v85, %v127
    %v133 = vadd.f32 %v94, %v127
    %v134 = vadd.f32 %v103, %v127
    %v135 = vadd.f32 %v112, %v127
    %v136 = vadd.f32 %v121, %v127
    %v145 = vrot.slane %v130, 7
    %vm146 = vcmask 1041409
    %v147 = vsel %vm146, %v145, %v129
    %v148 = vrot.slane %v131, 6
    %vm149 = vcmask 1042434
    %v150 = vsel %vm149, %v148, %v147
    %v151 = vrot.slane %v132, 5
    %vm152 = vcmask 1043459
    %v153 = vsel %vm152, %v151, %v150
    %v154 = vrot.slane %v133, 4
    %vm155 = vcmask 1044484
    %v156 = vsel %vm155, %v154, %v153
    %v157 = vrot.slane %v134, 3
    %vm158 = vcmask 1045509
    %v159 = vsel %vm158, %v157, %v156
    %v160 = vrot.slane %v135, 2
    %vm161 = vcmask 1046534
    %v162 = vsel %vm161, %v160, %v159
    %v163 = vrot.slane %v136, 1
    %vm164 = vcmask 1047559
    %v165 = vsel %vm164, %v163, %v162
    %167 = vrot.lane.b32.xlu0 %v165, 4
    %v168 = vpop.permute.xlu0 %167
    %170 = vrot.lane.b32.xlu0 %v165, 8
    %v171 = vpop.permute.xlu0 %170
    %173 = vrot.lane.b32.xlu0 %v165, 12
    %v174 = vpop.permute.xlu0 %173
    %176 = vrot.lane.b32.xlu0 %v165, 16
    %v177 = vpop.permute.xlu0 %176
    %179 = vrot.lane.b32.xlu0 %v165, 20
    %v180 = vpop.permute.xlu0 %179
    %182 = vrot.lane.b32.xlu0 %v165, 24
    %v183 = vpop.permute.xlu0 %182
    %185 = vrot.lane.b32.xlu0 %v165, 28
    %v186 = vpop.permute.xlu0 %185
    %v188 = vsel %vm49, %v165, %v168
    %vm189 = vcmask 64512
    %v190 = vsel %vm189, %v188, %v171
    %vm191 = vcmask 97280
    %v192 = vsel %vm191, %v190, %v174
    %vm193 = vcmask 130048
    %v194 = vsel %vm193, %v192, %v177
    %vm195 = vcmask 162816
    %v196 = vsel %vm195, %v194, %v180
    %vm197 = vcmask 195584
    %v198 = vsel %vm197, %v196, %v183
    %vm199 = vcmask 228352
    %v200 = vsel %vm199, %v198, %v186
    %vm201 = vcmask 261120
    %202 = vst.msk [vmem:[#allocation2] sm:$0xff] %vm201, %v200
    // Predicated region
    $region14: #{tpu_custom_call.1} parent=1 // pred_check
      _
    $region15: #{tpu_custom_call.1} parent=1 // pred_check_branch
      %204 = sbr.rel (0) target = $region17
    $region16: #{tpu_custom_call.1} parent=1 // pred_region
      %s206 = ssub.s32 128, 128
      %207 = vsyncadd [#allocation3], %s206
      %s209 = sshll.u32 [#allocation2], 4
      %s210 = int_to_ptr.vmem [resolvable:$true] %s209
      %212 = dma.vmem_to_hbm [thread:$0]  %s210, 128, %s3, [#allocation3]
    $region17: #{tpu_custom_call.1} parent=1 // pred_fallthru
      _
    // Predicated region
    $region18: #{tpu_custom_call.1} parent=1 // pred_check
      _
    $region19: #{tpu_custom_call.1} parent=1 // pred_check_branch
      %214 = sbr.rel (0) target = $region21
    $region20: #{tpu_custom_call.1} parent=1 // pred_region
      %215 = dma.done [#allocation3], 128
    $region21: #{tpu_custom_call.1} parent=1 // pred_fallthru
      _
    %216 = vsyncpa [#allocation3], 1

</llo_original>
